<compile_context>
chip_gen: v7x
topology: tpu7x:2x2x1
jax: 0.10.0
libtpu: 0.0.40
codegen_flags: <defaults>
</compile_context>

<pallas_src>
import functools

import jax
import jax.numpy as jnp
from jax.experimental import pallas as pl
from jax.experimental.pallas import tpu as pltpu

_LANE = 128


def _vmem_capacity_bytes(default=64 << 20):
    try:
        info = pltpu.get_tpu_info()
        return int(getattr(info, "vmem_capacity_bytes", default))
    except Exception:
        return default


def _ln_kernel_bias_free(x_ref, w_ref, o_ref, *, eps: float, inv_c: float):
    # x_ref: (tb, C, tl)   w_ref: (1, C, 1)
    x = x_ref[...].astype(jnp.float32)
    # Single pass over the tile: mu = E[x], var = E[x^2] - mu^2 (f32 accumulation).
    mu = jnp.sum(x, axis=-2, keepdims=True) * inv_c
    ex2 = jnp.sum(x * x, axis=-2, keepdims=True) * inv_c
    var = ex2 - mu * mu
    inv = jax.lax.rsqrt(var + eps)
    w = w_ref[...].astype(jnp.float32)
    # BiasFree_LayerNorm: x / sqrt(var + eps) * weight   (mean NOT subtracted)
    o_ref[...] = (x * (inv * w)).astype(o_ref.dtype)


def _ln_kernel_with_bias(x_ref, w_ref, b_ref, o_ref, *, eps: float, inv_c: float):
    # x_ref: (tb, C, tl)   w_ref/b_ref: (1, C, 1)
    x = x_ref[...].astype(jnp.float32)
    mu = jnp.sum(x, axis=-2, keepdims=True) * inv_c
    ex2 = jnp.sum(x * x, axis=-2, keepdims=True) * inv_c
    var = ex2 - mu * mu
    inv = jax.lax.rsqrt(var + eps)
    w = w_ref[...].astype(jnp.float32)
    bb = b_ref[...].astype(jnp.float32)
    # WithBias_LayerNorm: (x - mu) / sqrt(var + eps) * weight + bias
    o_ref[...] = ((x - mu) * (inv * w) + bb).astype(o_ref.dtype)


def layernorm_nchw(x, weight, bias=None, *, layer_norm_type="BiasFree",
                   eps=1e-5, max_block_bytes=None, vmem_limit_bytes=None):
    """LayerNorm over the channel dim of an NCHW tensor (LGCT LayerNorm)."""
    b, c, h, w = x.shape
    n = h * w
    bias_free = (layer_norm_type == "BiasFree")

    # Generation-aware budgets: ~VMEM/16 per block (2-8 MiB), explicit scoped
    # VMEM limit so double-buffered in+out blocks + f32 temps always fit.
    vmem_cap = _vmem_capacity_bytes()
    if max_block_bytes is None:
        max_block_bytes = max(2 << 20, min(8 << 20, vmem_cap // 16))
    if vmem_limit_bytes is None:
        vmem_limit_bytes = int(min(vmem_cap * 3 // 4, 96 << 20))

    # Flatten spatial dims only — a free reshape, NCHW memory layout kept.
    x3 = x.reshape(b, c, n)

    # --- Tile selection ---------------------------------------------------
    # Token (lane) tile: multiple of 128, budgeted in f32-EQUIVALENT bytes
    # (kernel upcasts to f32, so in-kernel temporaries are 4 B/elem regardless
    # of the input dtype).  No padding: partial tail block is masked by Pallas.
    n_ceil = pl.cdiv(n, _LANE) * _LANE
    tl = (max_block_bytes // (c * 4)) // _LANE * _LANE
    tl = max(_LANE, min(n_ceil, tl))

    # Batch grouping: for small feature maps fold several images into one
    # block so each grid step moves a reasonable amount of data.
    tb = 1
    while tb * 2 <= b and (tb * 2) * c * tl * 4 <= max_block_bytes:
        tb *= 2

    # Soft megacore guard: if the whole problem collapsed into one grid step
    # but the lane tile is large, split the token axis once (keeps tl >= 512).
    if pl.cdiv(b, tb) * pl.cdiv(n, tl) == 1 and tl >= 1024:
        tl = pl.cdiv(tl // 2, _LANE) * _LANE

    grid = (pl.cdiv(b, tb), pl.cdiv(n, tl))

    # Affine params stay f32 (matches PyTorch numerics; tiny resident tile).
    w3 = weight.astype(jnp.float32).reshape(1, c, 1)
    inv_c = 1.0 / float(c)

    x_spec = pl.BlockSpec((tb, c, tl), lambda i, j: (i, 0, j))
    p_spec = pl.BlockSpec((1, c, 1), lambda i, j: (0, 0, 0))
    out_spec = pl.BlockSpec((tb, c, tl), lambda i, j: (i, 0, j))

    if bias_free:
        kernel = functools.partial(_ln_kernel_bias_free, eps=eps, inv_c=inv_c)
        in_specs = [x_spec, p_spec]
        args = (x3, w3)
    else:
        if bias is None:
            raise ValueError("WithBias LayerNorm requires a bias array")
        b3 = bias.astype(jnp.float32).reshape(1, c, 1)
        kernel = functools.partial(_ln_kernel_with_bias, eps=eps, inv_c=inv_c)
        in_specs = [x_spec, p_spec, p_spec]
        args = (x3, w3, b3)

    out3 = pl.pallas_call(
        kernel,
        out_shape=jax.ShapeDtypeStruct((b, c, n), x.dtype),
        grid=grid,
        in_specs=in_specs,
        out_specs=out_spec,
        compiler_params=pltpu.CompilerParams(
            dimension_semantics=("parallel", "parallel"),
            vmem_limit_bytes=vmem_limit_bytes),
    )(*args)

    return out3.reshape(b, c, h, w)


def _reference(x, weight, bias, layer_norm_type, eps=1e-5):
    # Pure-JAX reference of the PyTorch module (to_3d -> LayerNorm -> to_4d).
    xt = jnp.transpose(x, (0, 2, 3, 1)).astype(jnp.float32)  # (B,H,W,C)
    mu = jnp.mean(xt, axis=-1, keepdims=True)
    var = jnp.mean(jnp.square(xt - mu), axis=-1, keepdims=True)  # unbiased=False
    inv = jax.lax.rsqrt(var + eps)
    if layer_norm_type == "BiasFree":
        out = xt * inv * weight
    else:
        out = (xt - mu) * inv * weight + bias
    return jnp.transpose(out, (0, 3, 1, 2)).astype(x.dtype)


if __name__ == "__main__":
    key = jax.random.PRNGKey(0)
    kx, kw, kb, kx2, kw2, kb2 = jax.random.split(key, 6)

    ok = True

    # Case 1: shapes implied by the module/test (B=2, C=4, H=W=16).
    B, C, H, W = 2, 4, 16, 16
    x = jax.random.normal(kx, (B, C, H, W), dtype=jnp.float32)
    weight = 1.0 + 0.1 * jax.random.normal(kw, (C,), dtype=jnp.float32)
    bias = 0.1 * jax.random.normal(kb, (C,), dtype=jnp.float32)
    for ln_type in ("BiasFree", "WithBias"):
        out = layernorm_nchw(x, weight, bias, layer_norm_type=ln_type)
        out = jax.block_until_ready(out)
        ref = _reference(x, weight, bias, ln_type)
        ok = ok and bool(jnp.allclose(out, ref, atol=2e-5, rtol=2e-5))

    # Case 2: non-128-multiple spatial size exercises the masked partial block.
    B2, C2, H2, W2 = 1, 48, 17, 17
    x2 = jax.random.normal(kx2, (B2, C2, H2, W2), dtype=jnp.float32)
    weight2 = 1.0 + 0.1 * jax.random.normal(kw2, (C2,), dtype=jnp.float32)
    bias2 = 0.1 * jax.random.normal(kb2, (C2,), dtype=jnp.float32)
    for ln_type in ("BiasFree", "WithBias"):
        out = layernorm_nchw(x2, weight2, bias2, layer_norm_type=ln_type)
        out = jax.block_until_ready(out)
        ref = _reference(x2, weight2, bias2, ln_type)
        ok = ok and bool(jnp.allclose(out, ref, atol=2e-5, rtol=2e-5))

    if ok:
        print("KERNEL_OK")
    else:
        print("MISMATCH")
</pallas_src>

<mosaic_0001>
module attributes {stable_mosaic.version = 11 : i64} {
  func.func @_ln_kernel_bias_free(%arg0: i32, %arg1: i32, %arg2: memref<2x4x256xf32, #tpu.memory_space<vmem>>, %arg3: memref<1x4x1xf32, #tpu.memory_space<vmem>>, %arg4: memref<2x4x256xf32, #tpu.memory_space<vmem>>) attributes {dimension_semantics = [#tpu.dimension_semantics<parallel>, #tpu.dimension_semantics<parallel>], iteration_bounds = array<i64: 1, 1>, scalar_prefetch = 0 : i64, scratch_operands = 0 : i64, tpu.core_type = #tpu.core_type<tc>, window_params = [{transform_indices = @transform_0, window_bounds = array<i64: 2, 4, 256>}, {pipeline_mode = #tpu.pipeline_mode<synchronous>, transform_indices = @transform_1, window_bounds = array<i64: 1, 4, 1>}, {transform_indices = @transform_2, window_bounds = array<i64: 2, 4, 256>}]} {
    %c0 = arith.constant 0 : index
    %c0_0 = arith.constant 0 : index
    %c0_1 = arith.constant 0 : index
    %0 = vector.load %arg2[%c0, %c0_0, %c0_1] : memref<2x4x256xf32, #tpu.memory_space<vmem>>, vector<2x4x256xf32>
    %cst = arith.constant dense<0.000000e+00> : vector<2x256xf32>
    %1 = vector.multi_reduction <add>, %0, %cst [1] : vector<2x4x256xf32> to vector<2x256xf32>
    %2 = vector.shape_cast %1 : vector<2x256xf32> to vector<2x1x256xf32>
    %cst_2 = arith.constant 2.500000e-01 : f32
    %3 = vector.broadcast %cst_2 : f32 to vector<2x1x256xf32>
    %4 = arith.mulf %2, %3 : vector<2x1x256xf32>
    %5 = arith.mulf %0, %0 : vector<2x4x256xf32>
    %cst_3 = arith.constant dense<0.000000e+00> : vector<2x256xf32>
    %6 = vector.multi_reduction <add>, %5, %cst_3 [1] : vector<2x4x256xf32> to vector<2x256xf32>
    %7 = vector.shape_cast %6 : vector<2x256xf32> to vector<2x1x256xf32>
    %cst_4 = arith.constant 2.500000e-01 : f32
    %8 = vector.broadcast %cst_4 : f32 to vector<2x1x256xf32>
    %9 = arith.mulf %7, %8 : vector<2x1x256xf32>
    %10 = arith.mulf %4, %4 : vector<2x1x256xf32>
    %11 = arith.subf %9, %10 : vector<2x1x256xf32>
    %cst_5 = arith.constant 9.99999974E-6 : f32
    %12 = vector.broadcast %cst_5 : f32 to vector<2x1x256xf32>
    %13 = arith.addf %11, %12 : vector<2x1x256xf32>
    %14 = math.rsqrt %13 : vector<2x1x256xf32>
    %c0_6 = arith.constant 0 : index
    %c0_7 = arith.constant 0 : index
    %c0_8 = arith.constant 0 : index
    %15 = vector.load %arg3[%c0_6, %c0_7, %c0_8] : memref<1x4x1xf32, #tpu.memory_space<vmem>>, vector<1x4x1xf32>
    %16 = vector.broadcast %14 : vector<2x1x256xf32> to vector<2x4x256xf32>
    %17 = vector.broadcast %15 : vector<1x4x1xf32> to vector<2x4x256xf32>
    %18 = arith.mulf %16, %17 : vector<2x4x256xf32>
    %19 = arith.mulf %0, %18 : vector<2x4x256xf32>
    %c0_9 = arith.constant 0 : index
    %c0_10 = arith.constant 0 : index
    %c0_11 = arith.constant 0 : index
    %20 = vector.load %arg4[%c0_9, %c0_10, %c0_11] : memref<2x4x256xf32, #tpu.memory_space<vmem>>, vector<2x4x256xf32>
    tpu.vector_store %arg4[%c0_9, %c0_10, %c0_11], %19 {strides = array<i32>} : memref<2x4x256xf32, #tpu.memory_space<vmem>>, vector<2x4x256xf32>,
    return
  }
  func.func @transform_0(%arg0: i32, %arg1: i32) -> (i32, i32, i32) {
    %c0_i32 = arith.constant 0 : i32
    %c0_i32_0 = arith.constant 0 : i32
    return %arg0, %c0_i32, %arg1 : i32, i32, i32
  }
  func.func @transform_1(%arg0: i32, %arg1: i32) -> (i32, i32, i32) {
    %c0_i32 = arith.constant 0 : i32
    %c0_i32_0 = arith.constant 0 : i32
    %c0_i32_1 = arith.constant 0 : i32
    %c0_i32_2 = arith.constant 0 : i32
    return %c0_i32, %c0_i32_0, %c0_i32_1 : i32, i32, i32
  }
  func.func @transform_2(%arg0: i32, %arg1: i32) -> (i32, i32, i32) {
    %c0_i32 = arith.constant 0 : i32
    %c0_i32_0 = arith.constant 0 : i32
    return %arg0, %c0_i32, %arg1 : i32, i32, i32
  }
}

</mosaic_0001>

<llo_original>
// kernel: tpu_custom_call.1
$region0: #{tpu_custom_call.1}
  #allocation0 [shape = 'u32[]', space=smem, size = 0x4, offset = 0x4, fixed_abs, tag = 'smem constant byte address 0x4 - core index']
  #allocation1 [shape = 'u32[144,128]{1,0:T(1,128)}', space=vmem, size = 0x12000, scoped, tag = 'internal scratch']
  %s0 = inlined_call_operand.hbm [shape: f32[2,4,256], index: 0, kind: input, shape index: {}]
  %s1 = inlined_call_operand.vmem [shape: f32[1,4,1], index: 1, kind: input, shape index: {}]
  %s2 = inlined_call_operand.hbm [shape: f32[2,4,256], index: 2, kind: output, shape index: {}]
  %s3 = sld [smem:[#allocation0]]
  $region22: #{tpu_custom_call.1} parent=0
    _
  %s5 = ssub.s32 1, %s3
  %s6 = scalar_select 0, %s5, %s3
  $region1: #{tpu_custom_call.1} parent=0
    #allocation2 [shape = 'u8[8192]{0}', space=vmem, size = 0x2000, scoped, tag = 'input window, operand 0, single buffered']
    #allocation3 [shape = 's32[1]{0}', space=sflag, size = 0x4, scoped, tag = 'scoped memory for tpu_custom_call.1']
    #allocation4 [shape = 's32[1]{0}', space=sflag, size = 0x4, scoped, tag = 'scoped memory for tpu_custom_call.1']
    #allocation5 [shape = 'u8[8192]{0}', space=vmem, size = 0x2000, scoped, tag = 'output window, operand 0, single buffered']
    %7 = vsyncpa [#allocation3], 0
    %8 = vsyncpa [#allocation4], 0
    // Predicated region
    $region2: #{tpu_custom_call.1} parent=1 // pred_check
      _
    $region3: #{tpu_custom_call.1} parent=1 // pred_check_branch
      %10 = sbr.rel (0) target = $region5
    $region4: #{tpu_custom_call.1} parent=1 // pred_region
      %s12 = ssub.s32 256, 256
      %13 = vsyncadd [#allocation3], %s12
      %s14 = sshll.u32 [#allocation2], 4
      %s15 = int_to_ptr.vmem [resolvable:$true] %s14
      %20 = dma.hbm_to_vmem [thread:$0]  %s0, 256, %s15, [#allocation3], 128, 128, 8
    $region5: #{tpu_custom_call.1} parent=1 // pred_fallthru
      _
    // Predicated region
    $region6: #{tpu_custom_call.1} parent=1 // pred_check
      _
    $region7: #{tpu_custom_call.1} parent=1 // pred_check_branch
      %22 = sbr.rel (0) target = $region9
    $region8: #{tpu_custom_call.1} parent=1 // pred_region
      _
    $region9: #{tpu_custom_call.1} parent=1 // pred_fallthru
      _
    // Predicated region
    $region10: #{tpu_custom_call.1} parent=1 // pred_check
      _
    $region11: #{tpu_custom_call.1} parent=1 // pred_check_branch
      %24 = sbr.rel (0) target = $region13
    $region12: #{tpu_custom_call.1} parent=1 // pred_region
      %25 = dma.done [#allocation3], 256
    $region13: #{tpu_custom_call.1} parent=1 // pred_fallthru
      _
    %v26 = vld [vmem:[#allocation2] sm:$0xff]
    %v27 = vld [vmem:[#allocation2 + $0x8] sm:$0xff]
    %v30 = vcombine.high %v26, %v26
    %v31 = vcombine.high %v27, %v27
    %vm34 = vcmask 1043456
    %v35 = vsel %vm34, %v26, 0.0
    %v36 = vrot.slane %v35, 4
    %v37 = vadd.f32 %v35, %v36
    %v38 = vrot.slane %v37, 2
    %v39 = vadd.f32 %v37, %v38
    %v40 = vrot.slane %v39, 1
    %v41 = vadd.f32 %v39, %v40
    %v42 = vsel %vm34, %v30, 0.0
    %v43 = vrot.slane %v42, 4
    %v44 = vadd.f32 %v42, %v43
    %v45 = vrot.slane %v44, 2
    %v46 = vadd.f32 %v44, %v45
    %v47 = vrot.slane %v46, 1
    %v48 = vadd.f32 %v46, %v47
    %v49 = vsel %vm34, %v27, 0.0
    %v50 = vrot.slane %v49, 4
    %v51 = vadd.f32 %v49, %v50
    %v52 = vrot.slane %v51, 2
    %v53 = vadd.f32 %v51, %v52
    %v54 = vrot.slane %v53, 1
    %v55 = vadd.f32 %v53, %v54
    %v56 = vsel %vm34, %v31, 0.0
    %v57 = vrot.slane %v56, 4
    %v58 = vadd.f32 %v56, %v57
    %v59 = vrot.slane %v58, 2
    %v60 = vadd.f32 %v58, %v59
    %v61 = vrot.slane %v60, 1
    %v62 = vadd.f32 %v60, %v61
    %v63 = vmul.f32 %v41, 0.25
    %v64 = vmul.f32 %v48, 0.25
    %v65 = vmul.f32 %v55, 0.25
    %v66 = vmul.f32 %v62, 0.25
    %v67 = vmul.f32 %v26, %v26
    %v68 = vmul.f32 %v27, %v27
    %v71 = vcombine.high %v67, %v67
    %v72 = vcombine.high %v68, %v68
    %v75 = vsel %vm34, %v67, 0.0
    %v76 = vrot.slane %v75, 4
    %v77 = vadd.f32 %v75, %v76
    %v78 = vrot.slane %v77, 2
    %v79 = vadd.f32 %v77, %v78
    %v80 = vrot.slane %v79, 1
    %v81 = vadd.f32 %v79, %v80
    %v82 = vsel %vm34, %v71, 0.0
    %v83 = vrot.slane %v82, 4
    %v84 = vadd.f32 %v82, %v83
    %v85 = vrot.slane %v84, 2
    %v86 = vadd.f32 %v84, %v85
    %v87 = vrot.slane %v86, 1
    %v88 = vadd.f32 %v86, %v87
    %v89 = vsel %vm34, %v68, 0.0
    %v90 = vrot.slane %v89, 4
    %v91 = vadd.f32 %v89, %v90
    %v92 = vrot.slane %v91, 2
    %v93 = vadd.f32 %v91, %v92
    %v94 = vrot.slane %v93, 1
    %v95 = vadd.f32 %v93, %v94
    %v96 = vsel %vm34, %v72, 0.0
    %v97 = vrot.slane %v96, 4
    %v98 = vadd.f32 %v96, %v97
    %v99 = vrot.slane %v98, 2
    %v100 = vadd.f32 %v98, %v99
    %v101 = vrot.slane %v100, 1
    %v102 = vadd.f32 %v100, %v101
    %v103 = vmul.f32 %v81, 0.25
    %v104 = vmul.f32 %v88, 0.25
    %v105 = vmul.f32 %v95, 0.25
    %v106 = vmul.f32 %v102, 0.25
    %v107 = vmul.f32 %v63, %v63
    %v108 = vmul.f32 %v64, %v64
    %v109 = vmul.f32 %v65, %v65
    %v110 = vmul.f32 %v66, %v66
    %v111 = vsub.f32 %v103, %v107
    %v112 = vsub.f32 %v104, %v108
    %v113 = vsub.f32 %v105, %v109
    %v114 = vsub.f32 %v106, %v110
    %v115 = vadd.f32 %v111, 1e-05
    %v116 = vadd.f32 %v112, 1e-05
    %v117 = vadd.f32 %v113, 1e-05
    %v118 = vadd.f32 %v114, 1e-05
    %v119 = vrsqrt.pop %v115
    %v120 = vrsqrt.pop %v116
    %v121 = vrsqrt.pop %v117
    %v122 = vrsqrt.pop %v118
    %v123 = vld [vmem:[%s1] sm:$0xf]
    %125 = vset.pattern.permute.xlu0 0
    %126 = vperm.xlu0 %125, %v123
    %v127 = vpop.permute.xlu0 %126
    %v129 = vmul.f32 %v119, %v127
    %v130 = vmul.f32 %v120, %v127
    %v131 = vmul.f32 %v121, %v127
    %v132 = vmul.f32 %v122, %v127
    %v137 = vcombine.low %v129, %v130
    %v138 = vcombine.low %v131, %v132
    %v141 = vmul.f32 %v26, %v137
    %v142 = vmul.f32 %v27, %v138
    %143 = vst [vmem:[#allocation5] sm:$0xff] %v141
    %144 = vst [vmem:[#allocation5 + $0x8] sm:$0xff] %v142
    // Predicated region
    $region14: #{tpu_custom_call.1} parent=1 // pred_check
      _
    $region15: #{tpu_custom_call.1} parent=1 // pred_check_branch
      %146 = sbr.rel (0) target = $region17
    $region16: #{tpu_custom_call.1} parent=1 // pred_region
      %s148 = ssub.s32 256, 256
      %149 = vsyncadd [#allocation4], %s148
      %s150 = sshll.u32 [#allocation5], 4
      %s151 = int_to_ptr.vmem [resolvable:$true] %s150
      %156 = dma.vmem_to_hbm [thread:$0]  %s151, 256, %s2, [#allocation4], 128, 128, 8
    $region17: #{tpu_custom_call.1} parent=1 // pred_fallthru
      _
    // Predicated region
    $region18: #{tpu_custom_call.1} parent=1 // pred_check
      _
    $region19: #{tpu_custom_call.1} parent=1 // pred_check_branch
      %158 = sbr.rel (0) target = $region21
    $region20: #{tpu_custom_call.1} parent=1 // pred_region
      %159 = dma.done [#allocation4], 256
    $region21: #{tpu_custom_call.1} parent=1 // pred_fallthru
      _
    %160 = vsyncpa [#allocation3], 1
    %161 = vsyncpa [#allocation4], 1

</llo_original>
